<compile_context>
chip_gen: v7x
topology: tpu7x:2x2x1
jax: 0.10.0
libtpu: 0.0.40
codegen_flags: <defaults>
</compile_context>

<pallas_src>
import functools

import jax
import jax.numpy as jnp
from jax import lax
from jax.experimental import pallas as pl
from jax.experimental.pallas import tpu as pltpu

ALPHA = 1.0
GAMMA = 2.0


def _round_up(x, m):
    return (x + m - 1) // m * m


def _num_slices():
    """2 parallel slices only on 2-TensorCore chips (v7x); 1 on v5e/v6e."""
    try:
        kind = jax.devices()[0].device_kind.lower()
    except Exception:
        return 1
    return 2 if ("v7" in kind or "7x" in kind) else 1


def _focal_partial_kernel(logits_ref, targets_ref, out_ref, acc_ref, *,
                          n_valid, tile_n, tiles_per_slice):
    s = pl.program_id(0)          # parallel slice (megacore split on v7x)
    i = pl.program_id(1)          # streaming / reduction step within the slice

    @pl.when(i == 0)
    def _init():
        acc_ref[...] = jnp.zeros_like(acc_ref)

    x = logits_ref[...].astype(jnp.float32)        # (tile_n, C), read in native dtype
    t = targets_ref[...]                           # (tile_n, 1) int32

    # numerically stable log-softmax pieces; keepdims keeps everything 2-D / lane-friendly
    m = jnp.max(x, axis=-1, keepdims=True)                        # (tile_n, 1)
    z = x - m
    lse = jnp.log(jnp.sum(jnp.exp(z), axis=-1, keepdims=True))    # (tile_n, 1)

    # gather z[row, target[row]] via an iota mask on the VPU (no full log-softmax temporary)
    cls = lax.broadcasted_iota(jnp.int32, x.shape, 1)
    z_t = jnp.sum(jnp.where(cls == t, z, 0.0), axis=-1, keepdims=True)
    picked = z_t - lse                                            # log p[target], (tile_n, 1)

    # rows past the true N (ragged edge tile or clamped/replayed tile) contribute exactly 0.
    # NOTE: uses the UNclamped global tile index (the index_map only clamps the DMA).
    global_tile = s * tiles_per_slice + i
    row_id = global_tile * tile_n + lax.broadcasted_iota(jnp.int32, picked.shape, 0)
    picked = jnp.where(row_id < n_valid, picked, 0.0)

    acc_ref[...] += picked

    @pl.when(i == tiles_per_slice - 1)
    def _finalize():
        out_ref[0, 0] = jnp.sum(acc_ref[...])


def focal_loss(logits, targets, alpha=ALPHA, gamma=GAMMA, tile_rows=None):
    """logits: (N, C) float (any dtype), targets: (N,) int class ids -> scalar f32 focal loss."""
    n, c = logits.shape
    itemsize = jnp.dtype(logits.dtype).itemsize
    num_slices = _num_slices()

    # sublane alignment for the row tile (8 for 32-bit, 16 for bf16, 32 for 8-bit dtypes)
    row_align = max(8, 32 // max(itemsize, 1))

    # VMEM bytes per tile row: 2x double-buffered logits block (lane-padded to 128 in VMEM)
    # + 2x double-buffered (tile_n,1) int32 targets block + (tile_n,1) f32 accumulator.
    c_lanes = _round_up(c, 128)
    per_row_vmem = 2 * (c_lanes * itemsize + 128 * 4) + 128 * 4

    vmem_budget = 26 * 1024 * 1024
    tile_n = max(row_align, (vmem_budget // per_row_vmem) // row_align * row_align)
    tile_n = min(tile_n, 32768, _round_up(n, row_align))
    if tile_rows is not None:                      # test hook: force multi-tile streaming
        tile_n = max(row_align, min(tile_n, _round_up(tile_rows, row_align)))

    tiles_total = pl.cdiv(n, tile_n)
    tiles_per_slice = pl.cdiv(tiles_total, num_slices)
    last_tile = tiles_total - 1

    # Targets are tiny -> pad them on the host so every (clamped) block is in bounds.
    # Logits are streamed unpadded, in their native dtype (no HBM pad / cast pass).
    n_tpad = tiles_total * tile_n
    targets_p = jnp.pad(targets.astype(jnp.int32), (0, n_tpad - n)).reshape(n_tpad, 1)

    est_vmem = tile_n * per_row_vmem + 256 * 1024
    vmem_limit = int(min(48 * 1024 * 1024, max(16 * 1024 * 1024, est_vmem * 5 // 4)))

    def block_map(s, i):
        return (jnp.minimum(s * tiles_per_slice + i, last_tile), 0)

    kernel = functools.partial(_focal_partial_kernel, n_valid=n, tile_n=tile_n,
                               tiles_per_slice=tiles_per_slice)

    partial_sums = pl.pallas_call(
        kernel,
        out_shape=jax.ShapeDtypeStruct((num_slices, 1), jnp.float32),
        grid=(num_slices, tiles_per_slice),
        in_specs=[
            pl.BlockSpec((tile_n, c), block_map),    # full (unpadded) C as last block dim
            pl.BlockSpec((tile_n, 1), block_map),
        ],
        out_specs=pl.BlockSpec((1, 1), lambda s, i: (s, 0),
                               memory_space=pltpu.MemorySpace.SMEM),
        scratch_shapes=[pltpu.VMEM((tile_n, 1), jnp.float32)],
        compiler_params=pltpu.CompilerParams(
            dimension_semantics=("parallel", "arbitrary"),
            vmem_limit_bytes=vmem_limit),
    )(logits, targets_p)

    # finalize once, outside the hot loop: mean CE + focal transform (matches torch snippet)
    ce = -jnp.sum(partial_sums) / jnp.float32(n)
    pt = jnp.exp(-ce)
    one_minus_pt = 1.0 - pt
    focal_w = one_minus_pt * one_minus_pt if gamma == 2 else one_minus_pt ** gamma
    return alpha * focal_w * ce


def focal_loss_ref(logits, targets, alpha=ALPHA, gamma=GAMMA):
    """Pure-JAX reference matching the torch semantics."""
    logp = jax.nn.log_softmax(logits.astype(jnp.float32), axis=-1)
    picked = jnp.take_along_axis(logp, targets[:, None].astype(jnp.int32), axis=-1)[:, 0]
    ce = -jnp.mean(picked)
    pt = jnp.exp(-ce)
    return alpha * (1.0 - pt) ** gamma * ce


if __name__ == "__main__":
    key = jax.random.PRNGKey(0)

    cases = [
        # (N, C, dtype, tile_rows)
        (8, 16, jnp.float32, None),      # small single tile (module's (N, C) logits, (N,) targets)
        (300, 20, jnp.float32, 64),      # multi-tile streaming + ragged last tile + masking
        (64, 130, jnp.bfloat16, None),   # native bf16 logits, C not a multiple of 128
    ]
    for idx, (n, c, dtype, tile_rows) in enumerate(cases):
        k1, k2, key = jax.random.split(key, 3)
        logits = jax.random.normal(k1, (n, c), dtype=jnp.float32).astype(dtype)
        targets = jax.random.randint(k2, (n,), 0, c, dtype=jnp.int32)

        out = focal_loss(logits, targets, tile_rows=tile_rows)
        jax.block_until_ready(out)
        ref = focal_loss_ref(logits, targets)
        assert jnp.allclose(out, ref, rtol=1e-5, atol=1e-5), (idx, out, ref)

    print("KERNEL_OK")
</pallas_src>

<mosaic_0001>
module attributes {stable_mosaic.version = 11 : i64} {
  func.func @_focal_partial_kernel(%arg0: i32, %arg1: i32, %arg2: memref<8x16xf32, #tpu.memory_space<vmem>>, %arg3: memref<8x1xi32, #tpu.memory_space<vmem>>, %arg4: memref<1x1xf32, #tpu.memory_space<smem>>, %arg5: memref<8x1xf32, #tpu.memory_space<vmem>>) attributes {dimension_semantics = [#tpu.dimension_semantics<parallel>, #tpu.dimension_semantics<arbitrary>], iteration_bounds = array<i64: 1, 1>, scalar_prefetch = 0 : i64, scratch_operands = 1 : i64, tpu.core_type = #tpu.core_type<tc>, window_params = [{transform_indices = @transform_0, window_bounds = array<i64: 8, 16>}, {transform_indices = @transform_1, window_bounds = array<i64: 8, 1>}, {transform_indices = @transform_2, window_bounds = array<i64: 1, 1>}]} {
    %c0_i32 = arith.constant 0 : i32
    %0 = arith.cmpi eq, %arg1, %c0_i32 : i32
    %1 = arith.extui %0 : i1 to i32
    %c0_i32_0 = arith.constant 0 : i32
    %2 = arith.cmpi ne, %1, %c0_i32_0 : i32
    scf.if %2 {
      %cst_15 = arith.constant 0.000000e+00 : f32
      %37 = vector.broadcast %cst_15 : f32 to vector<8x1xf32>
      %c0_16 = arith.constant 0 : index
      %c0_17 = arith.constant 0 : index
      %38 = vector.load %arg5[%c0_16, %c0_17] : memref<8x1xf32, #tpu.memory_space<vmem>>, vector<8x1xf32>
      tpu.vector_store %arg5[%c0_16, %c0_17], %37 {strides = array<i32>} : memref<8x1xf32, #tpu.memory_space<vmem>>, vector<8x1xf32>,
    } else {
    }
    %c0 = arith.constant 0 : index
    %c0_1 = arith.constant 0 : index
    %3 = vector.load %arg2[%c0, %c0_1] : memref<8x16xf32, #tpu.memory_space<vmem>>, vector<8x16xf32>
    %c0_2 = arith.constant 0 : index
    %c0_3 = arith.constant 0 : index
    %4 = vector.load %arg3[%c0_2, %c0_3] : memref<8x1xi32, #tpu.memory_space<vmem>>, vector<8x1xi32>
    %cst = arith.constant dense<0xFF800000> : vector<8xf32>
    %5 = vector.multi_reduction <maximumf>, %3, %cst [1] : vector<8x16xf32> to vector<8xf32>
    %6 = vector.shape_cast %5 : vector<8xf32> to vector<8x1xf32>
    %7 = vector.broadcast %6 : vector<8x1xf32> to vector<8x16xf32>
    %8 = arith.subf %3, %7 : vector<8x16xf32>
    %9 = math.exp %8 : vector<8x16xf32>
    %cst_4 = arith.constant dense<0.000000e+00> : vector<8xf32>
    %10 = vector.multi_reduction <add>, %9, %cst_4 [1] : vector<8x16xf32> to vector<8xf32>
    %11 = vector.shape_cast %10 : vector<8xf32> to vector<8x1xf32>
    %12 = math.log %11 : vector<8x1xf32>
    %13 = tpu.iota {dimensions = array<i32: 1>} : vector<8x16xi32>
    %14 = vector.broadcast %4 : vector<8x1xi32> to vector<8x16xi32>
    %15 = arith.cmpi eq, %13, %14 : vector<8x16xi32>
    %cst_5 = arith.constant 0.000000e+00 : f32
    %16 = vector.broadcast %cst_5 : f32 to vector<8x16xf32>
    %17 = arith.select %15, %8, %16 : vector<8x16xi1>, vector<8x16xf32>
    %cst_6 = arith.constant dense<0.000000e+00> : vector<8xf32>
    %18 = vector.multi_reduction <add>, %17, %cst_6 [1] : vector<8x16xf32> to vector<8xf32>
    %19 = vector.shape_cast %18 : vector<8xf32> to vector<8x1xf32>
    %20 = arith.subf %19, %12 : vector<8x1xf32>
    %c1_i32 = arith.constant 1 : i32
    %21 = arith.muli %arg0, %c1_i32 : i32
    %22 = arith.addi %21, %arg1 : i32
    %c8_i32 = arith.constant 8 : i32
    %23 = arith.muli %22, %c8_i32 : i32
    %24 = tpu.iota {dimensions = array<i32: 0>} : vector<8x1xi32>
    %25 = vector.broadcast %23 : i32 to vector<8x1xi32>
    %26 = arith.addi %25, %24 : vector<8x1xi32>
    %c8_i32_7 = arith.constant 8 : i32
    %27 = vector.broadcast %c8_i32_7 : i32 to vector<8x1xi32>
    %28 = arith.cmpi slt, %26, %27 : vector<8x1xi32>
    %cst_8 = arith.constant 0.000000e+00 : f32
    %29 = vector.broadcast %cst_8 : f32 to vector<8x1xf32>
    %30 = arith.select %28, %20, %29 : vector<8x1xi1>, vector<8x1xf32>
    %c0_9 = arith.constant 0 : index
    %c0_10 = arith.constant 0 : index
    %31 = vector.load %arg5[%c0_9, %c0_10] : memref<8x1xf32, #tpu.memory_space<vmem>>, vector<8x1xf32>
    %32 = arith.addf %31, %30 : vector<8x1xf32>
    %c0_11 = arith.constant 0 : index
    %c0_12 = arith.constant 0 : index
    %33 = vector.load %arg5[%c0_11, %c0_12] : memref<8x1xf32, #tpu.memory_space<vmem>>, vector<8x1xf32>
    tpu.vector_store %arg5[%c0_11, %c0_12], %32 {strides = array<i32>} : memref<8x1xf32, #tpu.memory_space<vmem>>, vector<8x1xf32>,
    %c0_i32_13 = arith.constant 0 : i32
    %34 = arith.cmpi eq, %arg1, %c0_i32_13 : i32
    %35 = arith.extui %34 : i1 to i32
    %c0_i32_14 = arith.constant 0 : i32
    %36 = arith.cmpi ne, %35, %c0_i32_14 : i32
    scf.if %36 {
      %c0_15 = arith.constant 0 : index
      %c0_16 = arith.constant 0 : index
      %37 = vector.load %arg5[%c0_15, %c0_16] : memref<8x1xf32, #tpu.memory_space<vmem>>, vector<8x1xf32>
      %38 = vector.shape_cast %37 : vector<8x1xf32> to vector<1x8x1xf32>
      %cst_17 = arith.constant dense<0.000000e+00> : vector<1xf32>
      %39 = vector.multi_reduction <add>, %38, %cst_17 [1, 2] : vector<1x8x1xf32> to vector<1xf32>
      %40 = vector.shape_cast %39 : vector<1xf32> to vector<1x1x1xf32>
      %41 = vector.extract %40[0, 0, 0] : f32 from vector<1x1x1xf32>
      %c0_18 = arith.constant 0 : index
      %c0_19 = arith.constant 0 : index
      %42 = memref.load %arg4[%c0_18, %c0_19] : memref<1x1xf32, #tpu.memory_space<smem>>
      memref.store %41, %arg4[%c0_18, %c0_19] : memref<1x1xf32, #tpu.memory_space<smem>>
    } else {
    }
    return
  }
  func.func @transform_0(%arg0: i32, %arg1: i32) -> (i32, i32) {
    %c1_i32 = arith.constant 1 : i32
    %0 = arith.muli %arg0, %c1_i32 : i32
    %1 = arith.addi %0, %arg1 : i32
    %c0_i32 = arith.constant 0 : i32
    %2 = arith.minsi %1, %c0_i32 : i32
    %c0_i32_0 = arith.constant 0 : i32
    %c0_i32_1 = arith.constant 0 : i32
    return %2, %c0_i32_0 : i32, i32
  }
  func.func @transform_1(%arg0: i32, %arg1: i32) -> (i32, i32) {
    %c1_i32 = arith.constant 1 : i32
    %0 = arith.muli %arg0, %c1_i32 : i32
    %1 = arith.addi %0, %arg1 : i32
    %c0_i32 = arith.constant 0 : i32
    %2 = arith.minsi %1, %c0_i32 : i32
    %c0_i32_0 = arith.constant 0 : i32
    %c0_i32_1 = arith.constant 0 : i32
    return %2, %c0_i32_0 : i32, i32
  }
  func.func @transform_2(%arg0: i32, %arg1: i32) -> (i32, i32) {
    %c0_i32 = arith.constant 0 : i32
    %c0_i32_0 = arith.constant 0 : i32
    return %arg0, %c0_i32 : i32, i32
  }
}

</mosaic_0001>

<llo_original>
// kernel: tpu_custom_call.1
$region0: #{tpu_custom_call.1}
  #allocation0 [shape = 'u32[]', space=smem, size = 0x4, offset = 0x4, fixed_abs, tag = 'smem constant byte address 0x4 - core index']
  #allocation1 [shape = 'u32[144,128]{1,0:T(1,128)}', space=vmem, size = 0x12000, scoped, tag = 'internal scratch']
  #allocation2 [shape = 'f32[8,1]{1,0:T(8,128)}', space=vmem, size = 0x1000, scoped, tag = 'scratch operand']
  %s0 = inlined_call_operand.vmem [shape: f32[8,16], index: 0, kind: input, shape index: {}]
  %s1 = inlined_call_operand.vmem [shape: s32[8,1], index: 1, kind: input, shape index: {}]
  %s2 = inlined_call_operand.hbm [shape: f32[1,1], index: 2, kind: output, shape index: {}]
  %s3 = sld [smem:[#allocation0]]
  $region26: #{tpu_custom_call.1} parent=0
    _
  %s5 = ssub.s32 1, %s3
  %s6 = scalar_select 0, %s5, %s3
  $region1: #{tpu_custom_call.1} parent=0
    #allocation3 [shape = 'u8[512]{0}', space=smem, size = 0x200, scoped, tag = 'output window, operand 0, single buffered']
    #allocation4 [shape = 's32[1]{0}', space=sflag, size = 0x4, scoped, tag = 'scoped memory for tpu_custom_call.1']
    %7 = vsyncpa [#allocation4], 0
    // Predicated region
    $region2: #{tpu_custom_call.1} parent=1 // pred_check
      _
    $region3: #{tpu_custom_call.1} parent=1 // pred_check_branch
      %9 = sbr.rel (0) target = $region5
    $region4: #{tpu_custom_call.1} parent=1 // pred_region
      %s10 = sadd.s32 0, 0
      %p11 = scmp.lt.s32.totalorder %s10, 0
      %s12 = scalar_select %p11, %s10, 0
      %p13 = scmp.lt.s32.totalorder %s12, 0
      %s14 = scalar_select %p13, %s12, 0
      %s15 = smul.addr %s14, 8
      %s16 = scalar_lea.vmem %s0, %s15
      %s17 = sadd.s32 0, 0
      %p18 = scmp.lt.s32.totalorder %s17, 0
      %s19 = scalar_select %p18, %s17, 0
    $region5: #{tpu_custom_call.1} parent=1 // pred_fallthru
      _
    // Predicated region
    $region6: #{tpu_custom_call.1} parent=1 // pred_check
      _
    $region7: #{tpu_custom_call.1} parent=1 // pred_check_branch
      %21 = sbr.rel (0) target = $region9
    $region8: #{tpu_custom_call.1} parent=1 // pred_region
      %s22 = sadd.s32 0, 0
      %p23 = scmp.lt.s32.totalorder %s22, 0
      %s24 = scalar_select %p23, %s22, 0
      %p25 = scmp.lt.s32.totalorder %s24, 0
      %s26 = scalar_select %p25, %s24, 0
      %s27 = smul.addr %s26, 8
      %s28 = scalar_lea.vmem %s1, %s27
      %s29 = sadd.s32 0, 0
      %p30 = scmp.lt.s32.totalorder %s29, 0
      %s31 = scalar_select %p30, %s29, 0
    $region9: #{tpu_custom_call.1} parent=1 // pred_fallthru
      _
    %s32 = sadd.s32 0, 0
    %p33 = scmp.lt.s32.totalorder %s32, 0
    %s34 = scalar_select %p33, %s32, 0
    %p35 = scmp.lt.s32.totalorder %s34, 0
    %s36 = scalar_select %p35, %s34, 0
    %s37 = smul.addr %s36, 8
    %s38 = scalar_lea.vmem %s0, %s37
    %s39 = sadd.s32 0, 0
    %p40 = scmp.lt.s32.totalorder %s39, 0
    %s41 = scalar_select %p40, %s39, 0
    %p42 = scmp.lt.s32.totalorder %s41, 0
    %s43 = scalar_select %p42, %s41, 0
    %s44 = smul.addr %s43, 8
    %s45 = scalar_lea.vmem %s1, %s44
    %s46 = sadd.s32 0, 0
    %p47 = scmp.lt.s32.totalorder %s46, 0
    %s48 = scalar_select %p47, %s46, 0
    %p49 = scmp.lt.s32.totalorder %s48, 0
    %s50 = scalar_select %p49, %s48, 0
    %s51 = smul.addr %s50, 8
    %s52 = scalar_lea.vmem %s0, %s51
    %s53 = sadd.s32 0, 0
    %p54 = scmp.lt.s32.totalorder %s53, 0
    %s55 = scalar_select %p54, %s53, 0
    %s56 = sadd.s32 0, 0
    %p57 = scmp.lt.s32.totalorder %s56, 0
    %s58 = scalar_select %p57, %s56, 0
    %p59 = scmp.lt.s32.totalorder %s58, 0
    %s60 = scalar_select %p59, %s58, 0
    %s61 = smul.addr %s60, 8
    %s62 = scalar_lea.vmem %s1, %s61
    %s63 = sadd.s32 0, 0
    %p64 = scmp.lt.s32.totalorder %s63, 0
    %s65 = scalar_select %p64, %s63, 0
    %p66 = scmp.eq.s32.totalorder 0, 0
    // Predicated region
    $region10: #{tpu_custom_call.1} parent=1 // pred_check
      %p67 = pneg %p66
    $region11: #{tpu_custom_call.1} parent=1 // pred_check_branch
      %69 = sbr.rel (%p67) target = $region13
    $region12: #{tpu_custom_call.1} parent=1 // pred_region
      %vm70 = vcmask 7168
      %71 = vst.msk [vmem:[#allocation2] sm:$0xff] %vm70, 0.0
    $region13: #{tpu_custom_call.1} parent=1 // pred_fallthru
      _
    %v72 = vld [vmem:[%s52] sm:$0xff]
    %v73 = vld [vmem:[%s62] sm:$0xff]
    %vm74 = vcmask 130048
    %v75 = vsel %vm74, %v72, -inf
    %76 = vmax.xlane.f32.xlu0 %v75
    %v77 = vpop.xlane.xlu0 %76
    %v78 = vsub.f32 %v72, %v77
    %v79 = vmul.f32 %v78, 1.442695
    %v80 = vpow.pop %v79
    %v81 = vsel %vm74, %v80, 0.0
    %82 = vadd.xlane.f32.xlu0 %v81
    %v83 = vpop.xlane.xlu0 %82
    %v84 = vlog2.pop %v83
    %v85 = vmul.f32 %v84, 0.6931472
    %v86 = vlaneseq
    %v87 = vand.u32 %v86, 127
    %88 = vset.pattern.permute.xlu0 0
    %89 = vperm.xlu0 %88, %v73
    %v90 = vpop.permute.xlu0 %89
    %vm91 = vcmp.eq.s32.totalorder %v87, %v90
    %v92 = vsel %vm91, %v78, 0.0
    %v93 = vsel %vm74, %v92, 0.0
    %94 = vadd.xlane.f32.xlu0 %v93
    %v95 = vpop.xlane.xlu0 %94
    %v96 = vsub.f32 %v95, %v85
    %s97 = sadd.s32 0, 0
    %s98 = smul.u32 %s97, 8
    %v99 = vlaneseq
    %v100 = vshrl.u32 %v99, 7
    %v101 = vstv %s98
    %v102 = vadd.s32 %v101, %v100
    %vm103 = vcmp.lt.s32.totalorder %v102, 8
    %v104 = vsel %vm103, %v96, 0.0
    %v105 = vld [vmem:[#allocation2] sm:$0xff]
    %v106 = vadd.f32 %v105, %v104
    %vm107 = vcmask 7168
    %108 = vst.msk [vmem:[#allocation2] sm:$0xff] %vm107, %v106
    // Predicated region
    $region14: #{tpu_custom_call.1} parent=1 // pred_check
      %p109 = pneg %p66
    $region15: #{tpu_custom_call.1} parent=1 // pred_check_branch
      %111 = sbr.rel (%p109) target = $region17
    $region16: #{tpu_custom_call.1} parent=1 // pred_region
      %v112 = vld [vmem:[#allocation2] sm:$0xff]
      %v113 = vsel %vm107, %v112, 0.0
      %114 = vadd.xlane.f32.xlu0 %v113
      %v115 = vpop.xlane.xlu0 %114
      %v116 = vrot.slane %v115, 4
      %v117 = vadd.f32 %v115, %v116
      %v118 = vrot.slane %v117, 2
      %v119 = vadd.f32 %v117, %v118
      %v120 = vrot.slane %v119, 1
      %v121 = vadd.f32 %v119, %v120
      %s122 = vtos %v121
      %s123 = scalar_lea.smem [#allocation3], 0
      %124 = sst [smem:[%s123]] %s122
    $region17: #{tpu_custom_call.1} parent=1 // pred_fallthru
      _
    // Predicated region
    $region18: #{tpu_custom_call.1} parent=1 // pred_check
      _
    $region19: #{tpu_custom_call.1} parent=1 // pred_check_branch
      %126 = sbr.rel (0) target = $region21
    $region20: #{tpu_custom_call.1} parent=1 // pred_region
      %s128 = ssub.s32 16, 16
      %129 = vsyncadd [#allocation4], %s128
      %132 = dma.smem_to_hbm [#allocation3], 16, %s2, [#allocation4]
    $region21: #{tpu_custom_call.1} parent=1 // pred_fallthru
      _
    // Predicated region
    $region22: #{tpu_custom_call.1} parent=1 // pred_check
      _
    $region23: #{tpu_custom_call.1} parent=1 // pred_check_branch
      %134 = sbr.rel (0) target = $region25
    $region24: #{tpu_custom_call.1} parent=1 // pred_region
      %135 = dma.done [#allocation4], 16
    $region25: #{tpu_custom_call.1} parent=1 // pred_fallthru
      _
    %136 = sfence
    %137 = vsyncpa [#allocation4], 1

</llo_original>
